<compile_context>
chip_gen: v6e
topology: v6e:2x2x1
jax: 0.10.0
libtpu: 0.0.40
codegen_flags: <defaults>
</compile_context>

<pallas_src>
import functools

import jax
import jax.numpy as jnp
from jax.experimental import pallas as pl
from jax.experimental.pallas import tpu as pltpu

LANE = 128      # lane (last-dim) alignment for unmasked stores / MXU
SUBLANE = 8     # sublane (second-to-last) alignment
MAX_BATCH_TILE = 256          # MXU-filling batch tile on v6e/v7x (fine on v5e)
PER_CORE_WEIGHT_BUDGET = 40 << 20   # conservative resident-weight budget (v7x TC)


def _round_up(n: int, m: int) -> int:
    return ((n + m - 1) // m) * m


def _fused_mlp_kernel(*refs, num_layers: int):
    """refs = (x_ref, w0, b0, w1, b1, ..., w_{L-1}, b_{L-1}, o_ref).

    x_ref: (TB, D0p) f32   w_i: (D_ip, D_{i+1}p) bf16   b_i: (1, D_{i+1}p) f32
    o_ref: (TB, D_Lp) f32  -- all lane-padded to multiples of 128.
    """
    x_ref = refs[0]
    o_ref = refs[-1]

    h = x_ref[...]                                  # f32 activations
    for i in range(num_layers):
        w_ref = refs[1 + 2 * i]
        b_ref = refs[2 + 2 * i]
        # bf16 x bf16 on the MXU, f32 accumulation.
        h = jnp.dot(h.astype(jnp.bfloat16), w_ref[...],
                    preferred_element_type=jnp.float32)
        h = h + b_ref[...]                          # f32 epilogue (v5e-safe)
        if i < num_layers - 1:
            h = jnp.maximum(h, 0.0)                 # ReLU on all but last layer
    o_ref[...] = h.astype(o_ref.dtype)


def _vmem_limit_bytes(batch_tile, dims_pad):
    """Padded footprint: double-buffered x/out tiles, resident W/b, live h."""
    nl = len(dims_pad) - 1
    x_b = batch_tile * dims_pad[0] * 4
    o_b = batch_tile * dims_pad[-1] * 4
    w_b = sum(dims_pad[i] * dims_pad[i + 1] * 2 for i in range(nl))   # bf16
    b_b = sum(dims_pad[i + 1] * 4 for i in range(nl))                 # f32
    h_b = batch_tile * max(dims_pad) * (4 + 2)      # f32 h + bf16 cast copy
    total = 2 * (x_b + o_b) + 2 * (w_b + b_b) + 2 * h_b
    total = int(total * 1.25) + (4 << 20)           # headroom
    return int(min(max(total, 16 << 20), 100 << 20))


def fused_mlp_pallas(x_pad, padded_params, *, batch_tile):
    """Single fused pallas_call over the padded MLP, tiled over the batch.

    x_pad: (Bp, D0p) f32; padded_params: list of ((D_ip, D_{i+1}p) bf16,
    (1, D_{i+1}p) f32).  Returns (Bp, D_Lp) f32 (still padded).
    """
    num_layers = len(padded_params)
    Bp, d0p = x_pad.shape
    dLp = padded_params[-1][0].shape[1]
    dims_pad = [d0p] + [w.shape[1] for w, _ in padded_params]
    assert Bp % batch_tile == 0

    in_specs = [pl.BlockSpec((batch_tile, d0p), lambda i: (i, 0))]
    flat_inputs = [x_pad]
    for w, b in padded_params:
        din_p, dout_p = w.shape
        # Constant index_map -> weights/biases stay VMEM-resident across the grid.
        in_specs.append(pl.BlockSpec((din_p, dout_p), lambda i: (0, 0)))
        in_specs.append(pl.BlockSpec((1, dout_p), lambda i: (0, 0)))
        flat_inputs += [w, b]

    kernel = functools.partial(_fused_mlp_kernel, num_layers=num_layers)
    return pl.pallas_call(
        kernel,
        out_shape=jax.ShapeDtypeStruct((Bp, dLp), jnp.float32),
        grid=(Bp // batch_tile,),
        in_specs=in_specs,
        out_specs=pl.BlockSpec((batch_tile, dLp), lambda i: (i, 0)),
        compiler_params=pltpu.CompilerParams(
            dimension_semantics=("parallel",),
            vmem_limit_bytes=_vmem_limit_bytes(batch_tile, dims_pad),
        ),
    )(*flat_inputs)


class NeuralNetworkPallas:
    """JAX/Pallas equivalent of the PyTorch NeuralNetwork MLP forward pass."""

    def __init__(self, *layers, key):
        self.dims = list(layers)
        self.params = []          # f32 master parameters (reference / training)
        keys = jax.random.split(key, len(layers) - 1)
        for i in range(len(layers) - 1):
            fan_in, fan_out = layers[i], layers[i + 1]
            wk, bk = jax.random.split(keys[i])
            # Deterministic init mimicking nn.Linear's uniform(-1/sqrt(fan_in), ..)
            bound = 1.0 / jnp.sqrt(jnp.float32(fan_in))
            w = jax.random.uniform(wk, (fan_in, fan_out), jnp.float32, -bound, bound)
            b = jax.random.uniform(bk, (fan_out,), jnp.float32, -bound, bound)
            self.params.append((w, b))

        # Precompute zero-padded, lane-dense parameters once (weights in bf16).
        self.dims_pad = [_round_up(d, LANE) for d in self.dims]
        self.padded_params = []
        for i, (w, b) in enumerate(self.params):
            din, dout = w.shape
            din_p, dout_p = self.dims_pad[i], self.dims_pad[i + 1]
            w_pad = (jnp.zeros((din_p, dout_p), jnp.float32)
                     .at[:din, :dout].set(w).astype(jnp.bfloat16))
            b_pad = jnp.zeros((1, dout_p), jnp.float32).at[0, :dout].set(b)
            self.padded_params.append((w_pad, b_pad))

        # Resident-weight budget check (per TensorCore; weights duplicate per
        # core under megacore batch parallelism on v7x).
        w_bytes = sum(int(w.size) * 2 + int(b.size) * 4
                      for w, b in self.padded_params)
        assert w_bytes < PER_CORE_WEIGHT_BUDGET, (
            "Padded weights exceed the per-TensorCore VMEM residency budget; "
            "the pipelined weight-prefetch fallback is not implemented yet.")

        self._forward_jit = jax.jit(self._forward_impl)

    def _forward_impl(self, x, padded_params):
        B, din = x.shape
        din_p = self.dims_pad[0]
        Bp = _round_up(B, SUBLANE)
        batch_tile = Bp if Bp <= MAX_BATCH_TILE else MAX_BATCH_TILE
        Bp = _round_up(Bp, batch_tile)
        x_pad = jnp.pad(x.astype(jnp.float32),
                        ((0, Bp - B), (0, din_p - din)))
        out_pad = fused_mlp_pallas(x_pad, padded_params, batch_tile=batch_tile)
        return out_pad[:B, : self.dims[-1]]

    def forward(self, x):
        assert x.shape[1] == self.dims[0]
        return self._forward_jit(x, self.padded_params)


def _reference_forward(params, x):
    """Pure f32 reference matching the PyTorch module's forward."""
    n = len(params)
    for i, (w, b) in enumerate(params):
        x = x @ w + b
        if i < n - 1:
            x = jnp.maximum(x, 0.0)
    return x


if __name__ == "__main__":
    key = jax.random.PRNGKey(0)
    k_model, k_x = jax.random.split(key)

    # Small MLP: 32 -> 64 -> 64 -> 10, batch = 8
    model = NeuralNetworkPallas(32, 64, 64, 10, key=k_model)
    x = jax.random.normal(k_x, (8, 32), dtype=jnp.float32)

    out = jax.block_until_ready(model.forward(x))

    ref = _reference_forward(model.params, x)
    assert out.shape == (8, 10)
    # bf16 weights / bf16 matmul inputs with f32 accumulation -> ~1e-2-level
    # relative error vs the pure-f32 reference is expected.
    assert jnp.allclose(out, ref, atol=3e-2, rtol=3e-2), (
        float(jnp.max(jnp.abs(out - ref))))

    print("KERNEL_OK")
</pallas_src>

<mosaic_0001>
module attributes {stable_mosaic.version = 11 : i64} {
  func.func @_fused_mlp_kernel(%arg0: i32, %arg1: memref<8x128xf32, #tpu.memory_space<vmem>>, %arg2: memref<128x128xbf16, #tpu.memory_space<vmem>>, %arg3: memref<1x128xf32, #tpu.memory_space<vmem>>, %arg4: memref<128x128xbf16, #tpu.memory_space<vmem>>, %arg5: memref<1x128xf32, #tpu.memory_space<vmem>>, %arg6: memref<128x128xbf16, #tpu.memory_space<vmem>>, %arg7: memref<1x128xf32, #tpu.memory_space<vmem>>, %arg8: memref<8x128xf32, #tpu.memory_space<vmem>>) attributes {dimension_semantics = [#tpu.dimension_semantics<parallel>], iteration_bounds = array<i64: 1>, scalar_prefetch = 0 : i64, scratch_operands = 0 : i64, tpu.core_type = #tpu.core_type<tc>, window_params = [{transform_indices = @transform_0, window_bounds = array<i64: 8, 128>}, {pipeline_mode = #tpu.pipeline_mode<synchronous>, transform_indices = @transform_1, window_bounds = array<i64: 128, 128>}, {pipeline_mode = #tpu.pipeline_mode<synchronous>, transform_indices = @transform_2, window_bounds = array<i64: 1, 128>}, {pipeline_mode = #tpu.pipeline_mode<synchronous>, transform_indices = @transform_3, window_bounds = array<i64: 128, 128>}, {pipeline_mode = #tpu.pipeline_mode<synchronous>, transform_indices = @transform_4, window_bounds = array<i64: 1, 128>}, {pipeline_mode = #tpu.pipeline_mode<synchronous>, transform_indices = @transform_5, window_bounds = array<i64: 128, 128>}, {pipeline_mode = #tpu.pipeline_mode<synchronous>, transform_indices = @transform_6, window_bounds = array<i64: 1, 128>}, {transform_indices = @transform_7, window_bounds = array<i64: 8, 128>}]} {
    %c0 = arith.constant 0 : index
    %c0_0 = arith.constant 0 : index
    %0 = vector.load %arg1[%c0, %c0_0] : memref<8x128xf32, #tpu.memory_space<vmem>>, vector<8x128xf32>
    %1 = arith.truncf %0 : vector<8x128xf32> to vector<8x128xbf16>
    %c0_1 = arith.constant 0 : index
    %c0_2 = arith.constant 0 : index
    %2 = vector.load %arg2[%c0_1, %c0_2] : memref<128x128xbf16, #tpu.memory_space<vmem>>, vector<128x128xbf16>
    %cst = arith.constant dense<0.000000e+00> : vector<8x128xf32>
    %3 = tpu.matmul %1, %2, %cst {dimension_numbers = #tpu.dot_dimension_numbers<[1], [0], [0], [1], [0, 0, 1, 1], [], []>} : vector<8x128xbf16>, vector<128x128xbf16>, vector<8x128xf32> -> vector<8x128xf32>
    %c0_3 = arith.constant 0 : index
    %c0_4 = arith.constant 0 : index
    %4 = vector.load %arg3[%c0_3, %c0_4] : memref<1x128xf32, #tpu.memory_space<vmem>>, vector<1x128xf32>
    %5 = vector.broadcast %4 : vector<1x128xf32> to vector<8x128xf32>
    %6 = arith.addf %3, %5 : vector<8x128xf32>
    %cst_5 = arith.constant 0.000000e+00 : f32
    %7 = vector.broadcast %cst_5 : f32 to vector<8x128xf32>
    %8 = arith.maximumf %6, %7 : vector<8x128xf32>
    %9 = arith.truncf %8 : vector<8x128xf32> to vector<8x128xbf16>
    %c0_6 = arith.constant 0 : index
    %c0_7 = arith.constant 0 : index
    %10 = vector.load %arg4[%c0_6, %c0_7] : memref<128x128xbf16, #tpu.memory_space<vmem>>, vector<128x128xbf16>
    %cst_8 = arith.constant dense<0.000000e+00> : vector<8x128xf32>
    %11 = tpu.matmul %9, %10, %cst_8 {dimension_numbers = #tpu.dot_dimension_numbers<[1], [0], [0], [1], [0, 0, 1, 1], [], []>} : vector<8x128xbf16>, vector<128x128xbf16>, vector<8x128xf32> -> vector<8x128xf32>
    %c0_9 = arith.constant 0 : index
    %c0_10 = arith.constant 0 : index
    %12 = vector.load %arg5[%c0_9, %c0_10] : memref<1x128xf32, #tpu.memory_space<vmem>>, vector<1x128xf32>
    %13 = vector.broadcast %12 : vector<1x128xf32> to vector<8x128xf32>
    %14 = arith.addf %11, %13 : vector<8x128xf32>
    %cst_11 = arith.constant 0.000000e+00 : f32
    %15 = vector.broadcast %cst_11 : f32 to vector<8x128xf32>
    %16 = arith.maximumf %14, %15 : vector<8x128xf32>
    %17 = arith.truncf %16 : vector<8x128xf32> to vector<8x128xbf16>
    %c0_12 = arith.constant 0 : index
    %c0_13 = arith.constant 0 : index
    %18 = vector.load %arg6[%c0_12, %c0_13] : memref<128x128xbf16, #tpu.memory_space<vmem>>, vector<128x128xbf16>
    %cst_14 = arith.constant dense<0.000000e+00> : vector<8x128xf32>
    %19 = tpu.matmul %17, %18, %cst_14 {dimension_numbers = #tpu.dot_dimension_numbers<[1], [0], [0], [1], [0, 0, 1, 1], [], []>} : vector<8x128xbf16>, vector<128x128xbf16>, vector<8x128xf32> -> vector<8x128xf32>
    %c0_15 = arith.constant 0 : index
    %c0_16 = arith.constant 0 : index
    %20 = vector.load %arg7[%c0_15, %c0_16] : memref<1x128xf32, #tpu.memory_space<vmem>>, vector<1x128xf32>
    %21 = vector.broadcast %20 : vector<1x128xf32> to vector<8x128xf32>
    %22 = arith.addf %19, %21 : vector<8x128xf32>
    %c0_17 = arith.constant 0 : index
    %c0_18 = arith.constant 0 : index
    %23 = vector.load %arg8[%c0_17, %c0_18] : memref<8x128xf32, #tpu.memory_space<vmem>>, vector<8x128xf32>
    tpu.vector_store %arg8[%c0_17, %c0_18], %22 {strides = array<i32>} : memref<8x128xf32, #tpu.memory_space<vmem>>, vector<8x128xf32>,
    return
  }
  func.func @transform_0(%arg0: i32) -> (i32, i32) {
    %c0_i32 = arith.constant 0 : i32
    %c0_i32_0 = arith.constant 0 : i32
    return %arg0, %c0_i32 : i32, i32
  }
  func.func @transform_1(%arg0: i32) -> (i32, i32) {
    %c0_i32 = arith.constant 0 : i32
    %c0_i32_0 = arith.constant 0 : i32
    %c0_i32_1 = arith.constant 0 : i32
    return %c0_i32, %c0_i32_0 : i32, i32
  }
  func.func @transform_2(%arg0: i32) -> (i32, i32) {
    %c0_i32 = arith.constant 0 : i32
    %c0_i32_0 = arith.constant 0 : i32
    %c0_i32_1 = arith.constant 0 : i32
    return %c0_i32, %c0_i32_0 : i32, i32
  }
  func.func @transform_3(%arg0: i32) -> (i32, i32) {
    %c0_i32 = arith.constant 0 : i32
    %c0_i32_0 = arith.constant 0 : i32
    %c0_i32_1 = arith.constant 0 : i32
    return %c0_i32, %c0_i32_0 : i32, i32
  }
  func.func @transform_4(%arg0: i32) -> (i32, i32) {
    %c0_i32 = arith.constant 0 : i32
    %c0_i32_0 = arith.constant 0 : i32
    %c0_i32_1 = arith.constant 0 : i32
    return %c0_i32, %c0_i32_0 : i32, i32
  }
  func.func @transform_5(%arg0: i32) -> (i32, i32) {
    %c0_i32 = arith.constant 0 : i32
    %c0_i32_0 = arith.constant 0 : i32
    %c0_i32_1 = arith.constant 0 : i32
    return %c0_i32, %c0_i32_0 : i32, i32
  }
  func.func @transform_6(%arg0: i32) -> (i32, i32) {
    %c0_i32 = arith.constant 0 : i32
    %c0_i32_0 = arith.constant 0 : i32
    %c0_i32_1 = arith.constant 0 : i32
    return %c0_i32, %c0_i32_0 : i32, i32
  }
  func.func @transform_7(%arg0: i32) -> (i32, i32) {
    %c0_i32 = arith.constant 0 : i32
    %c0_i32_0 = arith.constant 0 : i32
    return %arg0, %c0_i32 : i32, i32
  }
}

</mosaic_0001>

<llo_original>
// kernel: _forward_impl.1
$region0: #{_forward_impl.1}
  #allocation0 [shape = 'u32[]', space=smem, size = 0x4, offset = 0x4, fixed_abs, tag = 'smem constant byte address 0x4 - core index']
  #allocation1 [shape = 'u32[144,128]{1,0:T(1,128)}', space=vmem, size = 0x12000, scoped, tag = 'internal scratch']
  %s0 = inlined_call_operand.vmem [shape: f32[8,128], index: 0, kind: input, shape index: {}]
  %s1 = inlined_call_operand.hbm [shape: bf16[128,128], index: 1, kind: input, shape index: {}]
  %s2 = inlined_call_operand.vmem [shape: f32[1,128], index: 2, kind: input, shape index: {}]
  %s3 = inlined_call_operand.hbm [shape: bf16[128,128], index: 3, kind: input, shape index: {}]
  %s4 = inlined_call_operand.vmem [shape: f32[1,128], index: 4, kind: input, shape index: {}]
  %s5 = inlined_call_operand.hbm [shape: bf16[128,128], index: 5, kind: input, shape index: {}]
  %s6 = inlined_call_operand.vmem [shape: f32[1,128], index: 6, kind: input, shape index: {}]
  %s7 = inlined_call_operand.hbm [shape: f32[8,128], index: 7, kind: output, shape index: {}]
  %s8 = sld [smem:[#allocation0]]
  $region50: #{_forward_impl.1} parent=0
    _
  %s10 = ssub.s32 1, %s8
  %s11 = scalar_select 0, %s10, %s8
  $region1: #{_forward_impl.1} parent=0
    #allocation2 [shape = 'u8[32768]{0}', space=vmem, size = 0x8000, scoped, tag = 'input window, operand 1, single buffered']
    #allocation3 [shape = 's32[1]{0}', space=sflag, size = 0x4, scoped, tag = 'scoped memory for _forward_impl.1']
    #allocation4 [shape = 's32[1]{0}', space=sflag, size = 0x4, scoped, tag = 'scoped memory for _forward_impl.1']
    #allocation5 [shape = 'u8[32768]{0}', space=vmem, size = 0x8000, scoped, tag = 'input window, operand 3, single buffered']
    #allocation6 [shape = 's32[1]{0}', space=sflag, size = 0x4, scoped, tag = 'scoped memory for _forward_impl.1']
    #allocation7 [shape = 'u8[32768]{0}', space=vmem, size = 0x8000, scoped, tag = 'input window, operand 5, single buffered']
    #allocation8 [shape = 'u8[4096]{0}', space=vmem, size = 0x1000, scoped, tag = 'output window, operand 0, single buffered']
    %12 = vsyncpa [#allocation3], 0
    %13 = vsyncpa [#allocation6], 0
    %14 = vsyncpa [#allocation4], 0
    // Predicated region
    $region2: #{_forward_impl.1} parent=1 // pred_check
      _
    $region3: #{_forward_impl.1} parent=1 // pred_check_branch
      %16 = sbr.rel (0) target = $region5
    $region4: #{_forward_impl.1} parent=1 // pred_region
      _
    $region5: #{_forward_impl.1} parent=1 // pred_fallthru
      _
    // Predicated region
    $region6: #{_forward_impl.1} parent=1 // pred_check
      _
    $region7: #{_forward_impl.1} parent=1 // pred_check_branch
      %18 = sbr.rel (0) target = $region9
    $region8: #{_forward_impl.1} parent=1 // pred_region
      %s20 = ssub.s32 1024, 1024
      %21 = vsyncadd [#allocation3], %s20
      %s22 = sshll.u32 [#allocation2], 4
      %s23 = int_to_ptr.vmem [resolvable:$true] %s22
      %28 = dma.hbm_to_vmem [thread:$0]  %s1, 1024, %s23, [#allocation3], 64, 64, 4
    $region9: #{_forward_impl.1} parent=1 // pred_fallthru
      _
    // Predicated region
    $region10: #{_forward_impl.1} parent=1 // pred_check
      _
    $region11: #{_forward_impl.1} parent=1 // pred_check_branch
      %30 = sbr.rel (0) target = $region13
    $region12: #{_forward_impl.1} parent=1 // pred_region
      _
    $region13: #{_forward_impl.1} parent=1 // pred_fallthru
      _
    // Predicated region
    $region14: #{_forward_impl.1} parent=1 // pred_check
      _
    $region15: #{_forward_impl.1} parent=1 // pred_check_branch
      %32 = sbr.rel (0) target = $region17
    $region16: #{_forward_impl.1} parent=1 // pred_region
      %s34 = ssub.s32 1024, 1024
      %35 = vsyncadd [#allocation6], %s34
      %s36 = sshll.u32 [#allocation5], 4
      %s37 = int_to_ptr.vmem [resolvable:$true] %s36
      %42 = dma.hbm_to_vmem [thread:$0]  %s3, 1024, %s37, [#allocation6], 64, 64, 4
    $region17: #{_forward_impl.1} parent=1 // pred_fallthru
      _
    // Predicated region
    $region18: #{_forward_impl.1} parent=1 // pred_check
      _
    $region19: #{_forward_impl.1} parent=1 // pred_check_branch
      %44 = sbr.rel (0) target = $region21
    $region20: #{_forward_impl.1} parent=1 // pred_region
      _
    $region21: #{_forward_impl.1} parent=1 // pred_fallthru
      _
    // Predicated region
    $region22: #{_forward_impl.1} parent=1 // pred_check
      _
    $region23: #{_forward_impl.1} parent=1 // pred_check_branch
      %46 = sbr.rel (0) target = $region25
    $region24: #{_forward_impl.1} parent=1 // pred_region
      %s48 = ssub.s32 1024, 1024
      %49 = vsyncadd [#allocation6], %s48
      %s50 = sshll.u32 [#allocation7], 4
      %s51 = int_to_ptr.vmem [resolvable:$true] %s50
      %56 = dma.hbm_to_vmem [thread:$0]  %s5, 1024, %s51, [#allocation6], 64, 64, 4
    $region25: #{_forward_impl.1} parent=1 // pred_fallthru
      _
    // Predicated region
    $region26: #{_forward_impl.1} parent=1 // pred_check
      _
    $region27: #{_forward_impl.1} parent=1 // pred_check_branch
      %58 = sbr.rel (0) target = $region29
    $region28: #{_forward_impl.1} parent=1 // pred_region
      _
    $region29: #{_forward_impl.1} parent=1 // pred_fallthru
      _
    // Predicated region
    $region30: #{_forward_impl.1} parent=1 // pred_check
      _
    $region31: #{_forward_impl.1} parent=1 // pred_check_branch
      %60 = sbr.rel (0) target = $region33
    $region32: #{_forward_impl.1} parent=1 // pred_region
      %61 = dma.done [#allocation3], 1024
    $region33: #{_forward_impl.1} parent=1 // pred_fallthru
      _
    // Predicated region
    $region34: #{_forward_impl.1} parent=1 // pred_check
      _
    $region35: #{_forward_impl.1} parent=1 // pred_check_branch
      %63 = sbr.rel (0) target = $region37
    $region36: #{_forward_impl.1} parent=1 // pred_region
      %64 = dma.done [#allocation6], 1024
    $region37: #{_forward_impl.1} parent=1 // pred_fallthru
      _
    // Predicated region
    $region38: #{_forward_impl.1} parent=1 // pred_check
      _
    $region39: #{_forward_impl.1} parent=1 // pred_check_branch
      %66 = sbr.rel (0) target = $region41
    $region40: #{_forward_impl.1} parent=1 // pred_region
      %67 = dma.done [#allocation6], 1024
    $region41: #{_forward_impl.1} parent=1 // pred_fallthru
      _
    %v69 = vld [vmem:[%s0] sm:$0xff]
    %v70 = vpack.c.bf16 %v69, %v69
    %v71 = vld [vmem:[#allocation2] sm:$0xf]
    %v72 = vld [vmem:[#allocation2 + $0x4] sm:$0xf]
    %v73 = vld [vmem:[#allocation2 + $0x8] sm:$0xf]
    %v74 = vld [vmem:[#allocation2 + $0xc] sm:$0xf]
    %v75 = vld [vmem:[#allocation2 + $0x10] sm:$0xf]
    %v76 = vld [vmem:[#allocation2 + $0x14] sm:$0xf]
    %v77 = vld [vmem:[#allocation2 + $0x18] sm:$0xf]
    %v78 = vld [vmem:[#allocation2 + $0x1c] sm:$0xf]
    %v79 = vld [vmem:[#allocation2 + $0x20] sm:$0xf]
    %v80 = vld [vmem:[#allocation2 + $0x24] sm:$0xf]
    %v81 = vld [vmem:[#allocation2 + $0x28] sm:$0xf]
    %v82 = vld [vmem:[#allocation2 + $0x2c] sm:$0xf]
    %v83 = vld [vmem:[#allocation2 + $0x30] sm:$0xf]
    %v84 = vld [vmem:[#allocation2 + $0x34] sm:$0xf]
    %v85 = vld [vmem:[#allocation2 + $0x38] sm:$0xf]
    %v86 = vld [vmem:[#allocation2 + $0x3c] sm:$0xf]
    %v87 = vld [vmem:[%s2] sm:$0x1]
    %v89 = vlaneseq
    %v90 = vshrl.u32 %v89, 7
    %v91 = vsub.s32 0, %v90
    %v92 = vrot.slane %v87, %v91
    %v110 = vunpack.c.l.b16 %v71
    %v111 = vunpack.c.l.b16 %v72
    %v112 = vunpack.c.l.b16 %v73
    %v113 = vunpack.c.l.b16 %v74
    %v114 = vunpack.c.l.b16 %v75
    %v115 = vunpack.c.l.b16 %v76
    %v116 = vunpack.c.l.b16 %v77
    %v117 = vunpack.c.l.b16 %v78
    %v118 = vunpack.c.l.b16 %v79
    %v119 = vunpack.c.l.b16 %v80
    %v120 = vunpack.c.l.b16 %v81
    %v121 = vunpack.c.l.b16 %v82
    %v122 = vunpack.c.l.b16 %v83
    %v123 = vunpack.c.l.b16 %v84
    %v124 = vunpack.c.l.b16 %v85
    %v125 = vunpack.c.l.b16 %v86
    %v126 = vpack.c.b16 %v111, %v110
    %v127 = vpack.c.b16 %v113, %v112
    %v128 = vpack.c.b16 %v115, %v114
    %v129 = vpack.c.b16 %v117, %v116
    %v130 = vpack.c.b16 %v119, %v118
    %v131 = vpack.c.b16 %v121, %v120
    %v132 = vpack.c.b16 %v123, %v122
    %v133 = vpack.c.b16 %v125, %v124
    %142 = vmatprep.subr.bf16.mxu0 0
    %143 = vmatpush1.bf16.msra.mxu0 %v133
    %144 = vmatprep.subr.bf16.mxu0 0
    %145 = vmatpush1.bf16.msra.mxu0 %v132
    %146 = vmatprep.subr.bf16.mxu0 0
    %147 = vmatpush1.bf16.msra.mxu0 %v131
    %148 = vmatprep.subr.bf16.mxu0 0
    %149 = vmatpush1.bf16.msra.mxu0 %v130
    %150 = vmatprep.subr.bf16.mxu0 0
    %151 = vmatpush1.bf16.msra.mxu0 %v129
    %152 = vmatprep.subr.bf16.mxu0 0
    %153 = vmatpush1.bf16.msra.mxu0 %v128
    %154 = vmatprep.subr.bf16.mxu0 0
    %155 = vmatpush1.bf16.msra.mxu0 %v127
    %156 = vmatprep.subr.bf16.mxu0 0
    %157 = vmatpush1.bf16.msra.mxu0 %v126
    %158 = vmatprep.subr.bf16.mxu0 0
    %159 = vmatpush2.bf16.msra.mxu0 0
    %160 = vmatprep.subr.bf16.mxu0 0
    %161 = vmatpush2.bf16.msra.mxu0 0
    %162 = vmatprep.subr.bf16.mxu0 0
    %163 = vmatpush2.bf16.msra.mxu0 0
    %164 = vmatprep.subr.bf16.mxu0 0
    %165 = vmatpush2.bf16.msra.mxu0 0
    %166 = vmatprep.subr.bf16.mxu0 0
    %167 = vmatpush2.bf16.msra.mxu0 0
    %168 = vmatprep.subr.bf16.mxu0 0
    %169 = vmatpush2.bf16.msra.mxu0 0
    %170 = vmatprep.subr.bf16.mxu0 0
    %171 = vmatpush2.bf16.msra.mxu0 0
    %172 = vmatprep.subr.bf16.mxu0 0
    %173 = vmatpush2.bf16.msra.mxu0 0
    %174 = vmatprep.mubr.bf16.mxu0 0
    %175 = vmatmul.mubr.bf16.gmra.mxu0 %v70
    %v176 = vpop.f32.mrf.mxu0
    %v177 = vadd.f32 %v92, %v176
    %v178 = vpop.f32.mrf.mxu0
    %v179 = vpop.f32.mrf.mxu0
    %v180 = vpop.f32.mrf.mxu0
    %181 = vdwg.mxu0
    %v182 = vmax.f32 %v177, 0.0
    %v183 = vpack.c.bf16 %v182, %v182
    %v184 = vld [vmem:[#allocation5] sm:$0xf]
    %v185 = vld [vmem:[#allocation5 + $0x4] sm:$0xf]
    %v186 = vld [vmem:[#allocation5 + $0x8] sm:$0xf]
    %v187 = vld [vmem:[#allocation5 + $0xc] sm:$0xf]
    %v188 = vld [vmem:[#allocation5 + $0x10] sm:$0xf]
    %v189 = vld [vmem:[#allocation5 + $0x14] sm:$0xf]
    %v190 = vld [vmem:[#allocation5 + $0x18] sm:$0xf]
    %v191 = vld [vmem:[#allocation5 + $0x1c] sm:$0xf]
    %v192 = vld [vmem:[#allocation5 + $0x20] sm:$0xf]
    %v193 = vld [vmem:[#allocation5 + $0x24] sm:$0xf]
    %v194 = vld [vmem:[#allocation5 + $0x28] sm:$0xf]
    %v195 = vld [vmem:[#allocation5 + $0x2c] sm:$0xf]
    %v196 = vld [vmem:[#allocation5 + $0x30] sm:$0xf]
    %v197 = vld [vmem:[#allocation5 + $0x34] sm:$0xf]
    %v198 = vld [vmem:[#allocation5 + $0x38] sm:$0xf]
    %v199 = vld [vmem:[#allocation5 + $0x3c] sm:$0xf]
    %v200 = vld [vmem:[%s4] sm:$0x1]
    %v202 = vlaneseq
    %v203 = vshrl.u32 %v202, 7
    %v204 = vsub.s32 0, %v203
    %v205 = vrot.slane %v200, %v204
    %v223 = vunpack.c.l.b16 %v184
    %v224 = vunpack.c.l.b16 %v185
    %v225 = vunpack.c.l.b16 %v186
    %v226 = vunpack.c.l.b16 %v187
    %v227 = vunpack.c.l.b16 %v188
    %v228 = vunpack.c.l.b16 %v189
    %v229 = vunpack.c.l.b16 %v190
    %v230 = vunpack.c.l.b16 %v191
    %v231 = vunpack.c.l.b16 %v192
    %v232 = vunpack.c.l.b16 %v193
    %v233 = vunpack.c.l.b16 %v194
    %v234 = vunpack.c.l.b16 %v195
    %v235 = vunpack.c.l.b16 %v196
    %v236 = vunpack.c.l.b16 %v197
    %v237 = vunpack.c.l.b16 %v198
    %v238 = vunpack.c.l.b16 %v199
    %v239 = vpack.c.b16 %v224, %v223
    %v240 = vpack.c.b16 %v226, %v225
    %v241 = vpack.c.b16 %v228, %v227
    %v242 = vpack.c.b16 %v230, %v229
    %v243 = vpack.c.b16 %v232, %v231
    %v244 = vpack.c.b16 %v234, %v233
    %v245 = vpack.c.b16 %v236, %v235
    %v246 = vpack.c.b16 %v238, %v237
    %255 = vmatprep.subr.bf16.mxu0 0
    %256 = vmatpush1.bf16.msra.mxu0 %v246
    %257 = vmatprep.subr.bf16.mxu0 0
    %258 = vmatpush1.bf16.msra.mxu0 %v245
    %259 = vmatprep.subr.bf16.mxu0 0
    %260 = vmatpush1.bf16.msra.mxu0 %v244
    %261 = vmatprep.subr.bf16.mxu0 0
    %262 = vmatpush1.bf16.msra.mxu0 %v243
    %263 = vmatprep.subr.bf16.mxu0 0
    %264 = vmatpush1.bf16.msra.mxu0 %v242
    %265 = vmatprep.subr.bf16.mxu0 0
    %266 = vmatpush1.bf16.msra.mxu0 %v241
    %267 = vmatprep.subr.bf16.mxu0 0
    %268 = vmatpush1.bf16.msra.mxu0 %v240
    %269 = vmatprep.subr.bf16.mxu0 0
    %270 = vmatpush1.bf16.msra.mxu0 %v239
    %271 = vmatprep.subr.bf16.mxu0 0
    %272 = vmatpush2.bf16.msra.mxu0 0
    %273 = vmatprep.subr.bf16.mxu0 0
    %274 = vmatpush2.bf16.msra.mxu0 0
    %275 = vmatprep.subr.bf16.mxu0 0
    %276 = vmatpush2.bf16.msra.mxu0 0
    %277 = vmatprep.subr.bf16.mxu0 0
    %278 = vmatpush2.bf16.msra.mxu0 0
    %279 = vmatprep.subr.bf16.mxu0 0
    %280 = vmatpush2.bf16.msra.mxu0 0
    %281 = vmatprep.subr.bf16.mxu0 0
    %282 = vmatpush2.bf16.msra.mxu0 0
    %283 = vmatprep.subr.bf16.mxu0 0
    %284 = vmatpush2.bf16.msra.mxu0 0
    %285 = vmatprep.subr.bf16.mxu0 0
    %286 = vmatpush2.bf16.msra.mxu0 0
    %287 = vmatprep.mubr.bf16.mxu0 0
    %288 = vmatmul.mubr.bf16.gmra.mxu0 %v183
    %v289 = vpop.f32.mrf.mxu0
    %v290 = vadd.f32 %v205, %v289
    %v291 = vpop.f32.mrf.mxu0
    %v292 = vpop.f32.mrf.mxu0
    %v293 = vpop.f32.mrf.mxu0
    %294 = vdwg.mxu0
    %v295 = vmax.f32 %v290, 0.0
    %v296 = vpack.c.bf16 %v295, %v295
    %v297 = vld [vmem:[#allocation7] sm:$0xf]
    %v298 = vld [vmem:[#allocation7 + $0x4] sm:$0xf]
    %v299 = vld [vmem:[#allocation7 + $0x8] sm:$0xf]
    %v300 = vld [vmem:[#allocation7 + $0xc] sm:$0xf]
    %v301 = vld [vmem:[#allocation7 + $0x10] sm:$0xf]
    %v302 = vld [vmem:[#allocation7 + $0x14] sm:$0xf]
    %v303 = vld [vmem:[#allocation7 + $0x18] sm:$0xf]
    %v304 = vld [vmem:[#allocation7 + $0x1c] sm:$0xf]
    %v305 = vld [vmem:[#allocation7 + $0x20] sm:$0xf]
    %v306 = vld [vmem:[#allocation7 + $0x24] sm:$0xf]
    %v307 = vld [vmem:[#allocation7 + $0x28] sm:$0xf]
    %v308 = vld [vmem:[#allocation7 + $0x2c] sm:$0xf]
    %v309 = vld [vmem:[#allocation7 + $0x30] sm:$0xf]
    %v310 = vld [vmem:[#allocation7 + $0x34] sm:$0xf]
    %v311 = vld [vmem:[#allocation7 + $0x38] sm:$0xf]
    %v312 = vld [vmem:[#allocation7 + $0x3c] sm:$0xf]
    %v313 = vld [vmem:[%s6] sm:$0x1]
    %v315 = vlaneseq
    %v316 = vshrl.u32 %v315, 7
    %v317 = vsub.s32 0, %v316
    %v318 = vrot.slane %v313, %v317
    %v336 = vunpack.c.l.b16 %v297
    %v337 = vunpack.c.l.b16 %v298
    %v338 = vunpack.c.l.b16 %v299
    %v339 = vunpack.c.l.b16 %v300
    %v340 = vunpack.c.l.b16 %v301
    %v341 = vunpack.c.l.b16 %v302
    %v342 = vunpack.c.l.b16 %v303
    %v343 = vunpack.c.l.b16 %v304
    %v344 = vunpack.c.l.b16 %v305
    %v345 = vunpack.c.l.b16 %v306
    %v346 = vunpack.c.l.b16 %v307
    %v347 = vunpack.c.l.b16 %v308
    %v348 = vunpack.c.l.b16 %v309
    %v349 = vunpack.c.l.b16 %v310
    %v350 = vunpack.c.l.b16 %v311
    %v351 = vunpack.c.l.b16 %v312
    %v352 = vpack.c.b16 %v337, %v336
    %v353 = vpack.c.b16 %v339, %v338
    %v354 = vpack.c.b16 %v341, %v340
    %v355 = vpack.c.b16 %v343, %v342
    %v356 = vpack.c.b16 %v345, %v344
    %v357 = vpack.c.b16 %v347, %v346
    %v358 = vpack.c.b16 %v349, %v348
    %v359 = vpack.c.b16 %v351, %v350
    %368 = vmatprep.subr.bf16.mxu0 0
    %369 = vmatpush1.bf16.msra.mxu0 %v359
    %370 = vmatprep.subr.bf16.mxu0 0
    %371 = vmatpush1.bf16.msra.mxu0 %v358
    %372 = vmatprep.subr.bf16.mxu0 0
    %373 = vmatpush1.bf16.msra.mxu0 %v357
    %374 = vmatprep.subr.bf16.mxu0 0
    %375 = vmatpush1.bf16.msra.mxu0 %v356
    %376 = vmatprep.subr.bf16.mxu0 0
    %377 = vmatpush1.bf16.msra.mxu0 %v355
    %378 = vmatprep.subr.bf16.mxu0 0
    %379 = vmatpush1.bf16.msra.mxu0 %v354
    %380 = vmatprep.subr.bf16.mxu0 0
    %381 = vmatpush1.bf16.msra.mxu0 %v353
    %382 = vmatprep.subr.bf16.mxu0 0
    %383 = vmatpush1.bf16.msra.mxu0 %v352
    %384 = vmatprep.subr.bf16.mxu0 0
    %385 = vmatpush2.bf16.msra.mxu0 0
    %386 = vmatprep.subr.bf16.mxu0 0
    %387 = vmatpush2.bf16.msra.mxu0 0
    %388 = vmatprep.subr.bf16.mxu0 0
    %389 = vmatpush2.bf16.msra.mxu0 0
    %390 = vmatprep.subr.bf16.mxu0 0
    %391 = vmatpush2.bf16.msra.mxu0 0
    %392 = vmatprep.subr.bf16.mxu0 0
    %393 = vmatpush2.bf16.msra.mxu0 0
    %394 = vmatprep.subr.bf16.mxu0 0
    %395 = vmatpush2.bf16.msra.mxu0 0
    %396 = vmatprep.subr.bf16.mxu0 0
    %397 = vmatpush2.bf16.msra.mxu0 0
    %398 = vmatprep.subr.bf16.mxu0 0
    %399 = vmatpush2.bf16.msra.mxu0 0
    %400 = vmatprep.mubr.bf16.mxu0 0
    %401 = vmatmul.mubr.bf16.gmra.mxu0 %v296
    %v402 = vpop.f32.mrf.mxu0
    %v403 = vadd.f32 %v318, %v402
    %v404 = vpop.f32.mrf.mxu0
    %v405 = vpop.f32.mrf.mxu0
    %v406 = vpop.f32.mrf.mxu0
    %407 = vdwg.mxu0
    %408 = vst [vmem:[#allocation8] sm:$0xff] %v403
    // Predicated region
    $region42: #{_forward_impl.1} parent=1 // pred_check
      _
    $region43: #{_forward_impl.1} parent=1 // pred_check_branch
      %410 = sbr.rel (0) target = $region45
    $region44: #{_forward_impl.1} parent=1 // pred_region
      %s412 = ssub.s32 128, 128
      %413 = vsyncadd [#allocation4], %s412
      %s415 = sshll.u32 [#allocation8], 4
      %s416 = int_to_ptr.vmem [resolvable:$true] %s415
      %418 = dma.vmem_to_hbm [thread:$0]  %s416, 128, %s7, [#allocation4]
    $region45: #{_forward_impl.1} parent=1 // pred_fallthru
      _
    // Predicated region
    $region46: #{_forward_impl.1} parent=1 // pred_check
      _
    $region47: #{_forward_impl.1} parent=1 // pred_check_branch
      %420 = sbr.rel (0) target = $region49
    $region48: #{_forward_impl.1} parent=1 // pred_region
      %421 = dma.done [#allocation4], 128
    $region49: #{_forward_impl.1} parent=1 // pred_fallthru
      _
    %422 = vsyncpa [#allocation3], 1
    %423 = vsyncpa [#allocation6], 1
    %424 = vsyncpa [#allocation4], 1

</llo_original>
